<compile_context>
chip_gen: v6e
topology: v6e:2x2x1
jax: 0.10.0
libtpu: 0.0.40
codegen_flags: <defaults>
</compile_context>

<pallas_src>
import jax
import jax.numpy as jnp
from jax.experimental import pallas as pl
from jax.experimental.pallas import tpu as pltpu


# ----------------------------------------------------------------------------
# Kernel
# ----------------------------------------------------------------------------
def _attn_pool_kernel(x_ref, mask_ref, w1t_ref, b1_ref, w2_ref, b2_ref, out_ref):
    # x_ref:    (TB, S, H)  current batch block (activation dtype)
    # mask_ref: (TB, S)     attention mask (f32; zero on padded rows/positions)
    # w1t_ref:  (H, H)      fc1 weight, PRE-TRANSPOSED (H_in, H_out), act dtype
    # b1_ref:   (1, H)      fc1 bias (f32, added to the f32 MXU accumulator)
    # w2_ref:   (1, H)      fc2 weight row (activation dtype)
    # b2_ref:   (1, 1)      fc2 bias, SMEM scalar (f32)
    # out_ref:  (TB, H)
    x = x_ref[...]                                        # (TB, S, H) act dtype
    tb, s, h = x.shape

    # fc1 on the MXU: merge batch & sequence so M = TB*S; f32 accumulation.
    x2 = x.reshape(tb * s, h)                             # layout-preserving (S % 8 == 0)
    e = jnp.tanh(
        jnp.dot(x2, w1t_ref[...], preferred_element_type=jnp.float32)
        + b1_ref[...]
    )                                                     # (TB*S, H) f32
    # Keep the second-largest live tensor narrow (bf16 on v6e/v7x; no-op for f32).
    e = e.astype(x.dtype)

    # fc2: VPU multiply + lane (XLU) reduce — intentionally NOT an N=1 MXU matvec.
    logits = (
        jnp.sum(e * w2_ref[...], axis=-1, dtype=jnp.float32, keepdims=True)
        + b2_ref[0, 0]                                    # SMEM scalar
    )                                                     # (TB*S, 1) f32

    # exp + mask + normalize over the sequence axis (per batch row).
    alpha = jnp.exp(logits).reshape(tb, s, 1)             # (TB, S, 1) f32
    alpha = alpha * mask_ref[...][:, :, None]
    denom = jnp.sum(alpha, axis=1, keepdims=True) + 1e-8  # (TB, 1, 1)
    alpha = alpha * (1.0 / denom)                         # exact; denom is tiny

    # bmm(x^T, alpha): weighted sum over S, accumulated in f32 without
    # materializing an f32 copy of x.
    pooled = jnp.sum(x * alpha.astype(x.dtype), axis=1, dtype=jnp.float32)  # (TB, H)
    out_ref[...] = pooled.astype(out_ref.dtype)


# ----------------------------------------------------------------------------
# Wrapper helpers
# ----------------------------------------------------------------------------
def _round_up(n, m):
    return ((n + m - 1) // m) * m


def _vmem_capacity_bytes():
    """Trace-time VMEM capacity; conservative (v7x = 64 MiB) if unavailable."""
    cap = 64 * 1024 * 1024
    try:
        cap = int(pltpu.get_tpu_info().vmem_capacity_bytes)
    except Exception:
        pass
    return cap


def _choose_batch_tile(B, S, H, x_bytes, budget_bytes):
    """Batch tile: a multiple of 8 making M = TB*S large enough to fill the
    MXU (target ~256 rows on v6e/v7x; v5e saturates at 128), capped by a
    VMEM budget and keeping >= 2 grid steps when B allows (v7x megacore)."""
    if B <= 8:
        return B

    def step_bytes(tb):
        return (2 * tb * S * H * x_bytes          # x block (double-buffered)
                + 2 * tb * S * 4                  # mask block
                + H * H * x_bytes                 # w1^T (single-buffered)
                + tb * S * H * 4                  # f32 fc1 accumulator / tanh
                + tb * S * 4                      # alpha
                + 2 * tb * H * 4)                 # output block + f32 pooled

    tb = 8
    while (tb * S < 256                           # MXU M target
           and tb * 2 <= B
           and step_bytes(tb * 2) <= budget_bytes):
        tb *= 2
    # Keep at least 2 grid steps so the parallel axis can use both v7x cores.
    while tb > 8 and pl.cdiv(B, tb) < 2:
        tb //= 2
    return tb


def _const_spec(shape, pipeline_mode):
    """BlockSpec for a grid-invariant operand (block index constant)."""
    index_map = lambda i: (0,) * len(shape)
    if pipeline_mode is None:
        return pl.BlockSpec(shape, index_map)
    return pl.BlockSpec(shape, index_map, pipeline_mode=pipeline_mode)


def prepare_attention_pooling_params(w1, b1, w2, b2, compute_dtype=None):
    """One-time parameter preparation (hoisted out of the per-call path).

    w1: (H, H) PyTorch (out, in) layout. Returns (w1^T, b1, w2, b2) with the
    weight pre-transposed to (H_in, H_out) and cast to the activation compute
    dtype so fc1 runs a native-dtype MXU matmul (f32 accumulation).
    """
    if compute_dtype is None:
        compute_dtype = w1.dtype
    H = w1.shape[0]
    w1t = jnp.transpose(w1).astype(compute_dtype)       # (H_in, H_out)
    b1r = b1.reshape(1, H).astype(jnp.float32)          # added to f32 MXU acc
    w2r = w2.reshape(1, H).astype(compute_dtype)        # fc2 row
    b2r = b2.reshape(1, 1).astype(jnp.float32)          # SMEM scalar
    return w1t, b1r, w2r, b2r


# ----------------------------------------------------------------------------
# Forward
# ----------------------------------------------------------------------------
def attention_pooling(x, params, attn_mask=None):
    """x: (B, S, H); params from prepare_attention_pooling_params; -> (B, H)."""
    w1t, b1r, w2r, b2r = params
    B, S, H = x.shape
    x_bytes = jnp.dtype(x.dtype).itemsize
    w_bytes = jnp.dtype(w1t.dtype).itemsize

    vmem_cap = _vmem_capacity_bytes()
    budget = vmem_cap // 3

    # Pad S only when ragged (keeps the in-kernel merge reshape layout-preserving).
    S_pad = S if S % 8 == 0 else _round_up(S, 8)
    TB = _choose_batch_tile(B, S_pad, H, x_bytes, budget)
    B_pad = _round_up(B, TB)

    # Physically pad x only when strictly required (batch remainder / ragged S).
    needs_pad = (B_pad != B) or (S_pad != S)
    if needs_pad:
        x_in = jnp.zeros((B_pad, S_pad, H), x.dtype).at[:B, :S, :].set(x)
    else:
        x_in = x

    if attn_mask is None:
        mask = jnp.ones((B, S), jnp.float32)
    else:
        mask = attn_mask.astype(jnp.float32)
    if needs_pad:
        mask_in = jnp.zeros((B_pad, S_pad), jnp.float32).at[:B, :S].set(mask)
    else:
        mask_in = mask

    # VMEM budget for this launch (x double-buffered, weights single-buffered).
    needed = (2 * TB * S_pad * H * x_bytes
              + 2 * TB * S_pad * 4
              + H * H * w_bytes
              + 2 * H * 4 + 2 * H * w_bytes
              + TB * S_pad * H * 4
              + TB * S_pad * 4
              + 2 * TB * H * x_bytes + TB * H * 4)
    vmem_limit = int(min(3 * vmem_cap // 4,
                         max(16 * 1024 * 1024, needed * 5 // 4 + (2 << 20))))

    flops = (2 * B_pad * S_pad * H * H      # fc1
             + 2 * B_pad * S_pad * H        # fc2
             + 2 * B_pad * S_pad * H)       # weighted sum
    transcendentals = B_pad * S_pad * (H + 1)   # tanh + exp
    bytes_accessed = int(B_pad * S_pad * H * x_bytes + B_pad * S_pad * 4
                         + H * H * w_bytes + 2 * H * 4 + H * w_bytes + 4
                         + B_pad * H * x_bytes)

    def build(const_mode):
        in_specs = [
            pl.BlockSpec((TB, S_pad, H), lambda i: (i, 0, 0)),      # x
            pl.BlockSpec((TB, S_pad),    lambda i: (i, 0)),          # mask
            _const_spec((H, H), const_mode),                         # w1^T
            _const_spec((1, H), const_mode),                         # b1
            _const_spec((1, H), const_mode),                         # w2
            pl.BlockSpec(memory_space=pltpu.MemorySpace.SMEM),       # b2 scalar
        ]
        return pl.pallas_call(
            _attn_pool_kernel,
            out_shape=jax.ShapeDtypeStruct((B_pad, H), x.dtype),
            grid_spec=pltpu.PrefetchScalarGridSpec(
                num_scalar_prefetch=0,
                grid=(B_pad // TB,),
                in_specs=in_specs,
                out_specs=pl.BlockSpec((TB, H), lambda i: (i, 0)),
            ),
            compiler_params=pltpu.CompilerParams(
                dimension_semantics=("parallel",),
                vmem_limit_bytes=vmem_limit),
            cost_estimate=pl.CostEstimate(
                flops=flops, transcendentals=transcendentals,
                bytes_accessed=bytes_accessed),
        )

    try:
        # Grid-invariant operands single-buffered (their block never changes).
        out_p = build(pl.Buffered(1))(x_in, mask_in, w1t, b1r, w2r, b2r)
    except Exception:
        # Fallback if this jax build rejects buffer_count=1 / pipeline_mode:
        # identical kernel, weights just double-buffered.
        out_p = build(None)(x_in, mask_in, w1t, b1r, w2r, b2r)

    return out_p[:B] if B_pad != B else out_p


# ----------------------------------------------------------------------------
# Reference (pure JAX, mirrors the PyTorch forward)
# ----------------------------------------------------------------------------
def attention_pooling_ref(x, w1, b1, w2, b2, attn_mask=None):
    e = jnp.tanh(jnp.einsum("bsh,oh->bso", x, w1) + b1)
    alpha = jnp.exp(jnp.einsum("bsh,oh->bso", e, w2) + b2)   # (B, S, 1)
    if attn_mask is not None:
        alpha = alpha * attn_mask[:, :, None]
    alpha = alpha / (jnp.sum(alpha, axis=1, keepdims=True) + 1e-8)
    out = jnp.einsum("bsh,bso->bho", x, alpha)               # (B, H, 1)
    return out.reshape(x.shape[0], -1)


if __name__ == "__main__":
    B, S, H = 2, 8, 32
    initializer_range = 0.02

    key = jax.random.PRNGKey(0)
    kx, km, kw1, kw2 = jax.random.split(key, 4)

    x = jax.random.normal(kx, (B, S, H), dtype=jnp.float32)
    attn_mask = (jax.random.uniform(km, (B, S)) > 0.2).astype(jnp.float32)

    # Deterministic parameter init matching module.__init__ / init_weights:
    # Linear weights ~ N(0, initializer_range), biases = 0.
    w1 = initializer_range * jax.random.normal(kw1, (H, H), dtype=jnp.float32)
    b1 = jnp.zeros((H,), dtype=jnp.float32)
    w2 = initializer_range * jax.random.normal(kw2, (1, H), dtype=jnp.float32)
    b2 = jnp.zeros((1,), dtype=jnp.float32)

    # One-time weight prep (transpose / cast), hoisted out of the call path.
    params = prepare_attention_pooling_params(w1, b1, w2, b2, compute_dtype=x.dtype)

    out = attention_pooling(x, params, attn_mask)
    out = jax.block_until_ready(out)

    ref = attention_pooling_ref(x, w1, b1, w2, b2, attn_mask)
    assert out.shape == (B, H)
    max_err = float(jnp.max(jnp.abs(out - ref)))
    assert jnp.allclose(out, ref, atol=2e-3, rtol=2e-3), max_err

    print("KERNEL_OK")
</pallas_src>

<mosaic_0001>
module attributes {stable_mosaic.version = 11 : i64} {
  func.func @_attn_pool_kernel(%arg0: i32, %arg1: memref<2x8x32xf32, #tpu.memory_space<vmem>>, %arg2: memref<2x8xf32, #tpu.memory_space<vmem>>, %arg3: memref<32x32xf32, #tpu.memory_space<vmem>>, %arg4: memref<1x32xf32, #tpu.memory_space<vmem>>, %arg5: memref<1x32xf32, #tpu.memory_space<vmem>>, %arg6: memref<1x1xf32, #tpu.memory_space<smem>>, %arg7: memref<2x32xf32, #tpu.memory_space<vmem>>) attributes {dimension_semantics = [#tpu.dimension_semantics<parallel>], iteration_bounds = array<i64: 1>, scalar_prefetch = 0 : i64, scratch_operands = 0 : i64, tpu.core_type = #tpu.core_type<tc>, window_params = [{transform_indices = @transform_0, window_bounds = array<i64: 2, 8, 32>}, {transform_indices = @transform_1, window_bounds = array<i64: 2, 8>}, {pipeline_mode = #tpu.pipeline_mode<synchronous>, transform_indices = @transform_2, window_bounds = array<i64: 32, 32>}, {pipeline_mode = #tpu.pipeline_mode<synchronous>, transform_indices = @transform_3, window_bounds = array<i64: 1, 32>}, {pipeline_mode = #tpu.pipeline_mode<synchronous>, transform_indices = @transform_4, window_bounds = array<i64: 1, 32>}, {transform_indices = @transform_5, window_bounds = array<i64: 1, 1>}, {transform_indices = @transform_6, window_bounds = array<i64: 2, 32>}]} {
    %c0 = arith.constant 0 : index
    %c0_0 = arith.constant 0 : index
    %c0_1 = arith.constant 0 : index
    %0 = vector.load %arg1[%c0, %c0_0, %c0_1] : memref<2x8x32xf32, #tpu.memory_space<vmem>>, vector<2x8x32xf32>
    %1 = vector.shape_cast %0 : vector<2x8x32xf32> to vector<16x32xf32>
    %c0_2 = arith.constant 0 : index
    %c0_3 = arith.constant 0 : index
    %2 = vector.load %arg3[%c0_2, %c0_3] : memref<32x32xf32, #tpu.memory_space<vmem>>, vector<32x32xf32>
    %cst = arith.constant dense<0.000000e+00> : vector<16x32xf32>
    %3 = tpu.matmul %1, %2, %cst {dimension_numbers = #tpu.dot_dimension_numbers<[1], [0], [0], [1], [0, 0, 1, 1], [], []>} : vector<16x32xf32>, vector<32x32xf32>, vector<16x32xf32> -> vector<16x32xf32>
    %c0_4 = arith.constant 0 : index
    %c0_5 = arith.constant 0 : index
    %4 = vector.load %arg4[%c0_4, %c0_5] : memref<1x32xf32, #tpu.memory_space<vmem>>, vector<1x32xf32>
    %5 = vector.broadcast %4 : vector<1x32xf32> to vector<16x32xf32>
    %6 = arith.addf %3, %5 : vector<16x32xf32>
    %7 = math.tanh %6 : vector<16x32xf32>
    %c0_6 = arith.constant 0 : index
    %c0_7 = arith.constant 0 : index
    %8 = vector.load %arg5[%c0_6, %c0_7] : memref<1x32xf32, #tpu.memory_space<vmem>>, vector<1x32xf32>
    %9 = vector.broadcast %8 : vector<1x32xf32> to vector<16x32xf32>
    %10 = arith.mulf %7, %9 : vector<16x32xf32>
    %cst_8 = arith.constant dense<0.000000e+00> : vector<16xf32>
    %11 = vector.multi_reduction <add>, %10, %cst_8 [1] : vector<16x32xf32> to vector<16xf32>
    %12 = vector.shape_cast %11 : vector<16xf32> to vector<16x1xf32>
    %c0_9 = arith.constant 0 : index
    %c0_10 = arith.constant 0 : index
    %13 = memref.load %arg6[%c0_9, %c0_10] : memref<1x1xf32, #tpu.memory_space<smem>>
    %14 = vector.broadcast %13 : f32 to vector<16x1xf32>
    %15 = arith.addf %12, %14 : vector<16x1xf32>
    %16 = math.exp %15 : vector<16x1xf32>
    %17 = vector.shape_cast %16 : vector<16x1xf32> to vector<2x8x1xf32>
    %c0_11 = arith.constant 0 : index
    %c0_12 = arith.constant 0 : index
    %18 = vector.load %arg2[%c0_11, %c0_12] : memref<2x8xf32, #tpu.memory_space<vmem>>, vector<2x8xf32>
    %19 = vector.shape_cast %18 : vector<2x8xf32> to vector<2x8x1xf32>
    %20 = arith.mulf %17, %19 : vector<2x8x1xf32>
    %cst_13 = arith.constant dense<0.000000e+00> : vector<2x1xf32>
    %21 = vector.multi_reduction <add>, %20, %cst_13 [1] : vector<2x8x1xf32> to vector<2x1xf32>
    %22 = vector.shape_cast %21 : vector<2x1xf32> to vector<2x1x1xf32>
    %cst_14 = arith.constant 9.99999993E-9 : f32
    %23 = vector.broadcast %cst_14 : f32 to vector<2x1x1xf32>
    %24 = arith.addf %22, %23 : vector<2x1x1xf32>
    %cst_15 = arith.constant 1.000000e+00 : f32
    %25 = vector.broadcast %cst_15 : f32 to vector<2x1x1xf32>
    %26 = arith.divf %25, %24 : vector<2x1x1xf32>
    %27 = vector.broadcast %26 : vector<2x1x1xf32> to vector<2x8x1xf32>
    %28 = arith.mulf %20, %27 : vector<2x8x1xf32>
    %29 = vector.broadcast %28 : vector<2x8x1xf32> to vector<2x8x32xf32>
    %30 = arith.mulf %0, %29 : vector<2x8x32xf32>
    %cst_16 = arith.constant dense<0.000000e+00> : vector<2x32xf32>
    %31 = vector.multi_reduction <add>, %30, %cst_16 [1] : vector<2x8x32xf32> to vector<2x32xf32>
    %c0_17 = arith.constant 0 : index
    %c0_18 = arith.constant 0 : index
    %32 = vector.load %arg7[%c0_17, %c0_18] : memref<2x32xf32, #tpu.memory_space<vmem>>, vector<2x32xf32>
    tpu.vector_store %arg7[%c0_17, %c0_18], %31 {strides = array<i32>} : memref<2x32xf32, #tpu.memory_space<vmem>>, vector<2x32xf32>,
    return
  }
  func.func @transform_0(%arg0: i32) -> (i32, i32, i32) {
    %c0_i32 = arith.constant 0 : i32
    %c0_i32_0 = arith.constant 0 : i32
    %c0_i32_1 = arith.constant 0 : i32
    return %arg0, %c0_i32, %c0_i32_0 : i32, i32, i32
  }
  func.func @transform_1(%arg0: i32) -> (i32, i32) {
    %c0_i32 = arith.constant 0 : i32
    %c0_i32_0 = arith.constant 0 : i32
    return %arg0, %c0_i32 : i32, i32
  }
  func.func @transform_2(%arg0: i32) -> (i32, i32) {
    %c0_i32 = arith.constant 0 : i32
    %c0_i32_0 = arith.constant 0 : i32
    %c0_i32_1 = arith.constant 0 : i32
    return %c0_i32, %c0_i32_0 : i32, i32
  }
  func.func @transform_3(%arg0: i32) -> (i32, i32) {
    %c0_i32 = arith.constant 0 : i32
    %c0_i32_0 = arith.constant 0 : i32
    %c0_i32_1 = arith.constant 0 : i32
    return %c0_i32, %c0_i32_0 : i32, i32
  }
  func.func @transform_4(%arg0: i32) -> (i32, i32) {
    %c0_i32 = arith.constant 0 : i32
    %c0_i32_0 = arith.constant 0 : i32
    %c0_i32_1 = arith.constant 0 : i32
    return %c0_i32, %c0_i32_0 : i32, i32
  }
  func.func @transform_5(%arg0: i32) -> (i32, i32) {
    %c0_i32 = arith.constant 0 : i32
    %c0_i32_0 = arith.constant 0 : i32
    %c0_i32_1 = arith.constant 0 : i32
    return %c0_i32, %c0_i32_0 : i32, i32
  }
  func.func @transform_6(%arg0: i32) -> (i32, i32) {
    %c0_i32 = arith.constant 0 : i32
    %c0_i32_0 = arith.constant 0 : i32
    return %arg0, %c0_i32 : i32, i32
  }
}

module attributes {stable_mosaic.version = 11 : i64} {
  func.func @_attn_pool_kernel(%arg0: i32, %arg1: memref<2x8x32xf32, #tpu.memory_space<vmem>>, %arg2: memref<2x8xf32, #tpu.memory_space<vmem>>, %arg3: memref<32x32xf32, #tpu.memory_space<vmem>>, %arg4: memref<1x32xf32, #tpu.memory_space<vmem>>, %arg5: memref<1x32xf32, #tpu.memory_space<vmem>>, %arg6: memref<1x1xf32, #tpu.memory_space<smem>>, %arg7: memref<2x32xf32, #tpu.memory_space<vmem>>) attributes {dimension_semantics = [#tpu.dimension_semantics<parallel>], iteration_bounds = array<i64: 1>, scalar_prefetch = 0 : i64, scratch_operands = 0 : i64, tpu.core_type = #tpu.core_type<tc>, window_params = [{transform_indices = @transform_0, window_bounds = array<i64: 2, 8, 32>}, {transform_indices = @transform_1, window_bounds = array<i64: 2, 8>}, {pipeline_mode = #tpu.pipeline_mode<synchronous>, transform_indices = @transform_2, window_bounds = array<i64: 32, 32>}, {pipeline_mode = #tpu.pipeline_mode<synchronous>, transform_indices = @transform_3, window_bounds = array<i64: 1, 32>}, {pipeline_mode = #tpu.pipeline_mode<synchronous>, transform_indices = @transform_4, window_bounds = array<i64: 1, 32>}, {transform_indices = @transform_5, window_bounds = array<i64: 1, 1>}, {transform_indices = @transform_6, window_bounds = array<i64: 2, 32>}]} {
    %c0 = arith.constant 0 : index
    %c0_0 = arith.constant 0 : index
    %c0_1 = arith.constant 0 : index
    %0 = vector.load %arg1[%c0, %c0_0, %c0_1] : memref<2x8x32xf32, #tpu.memory_space<vmem>>, vector<2x8x32xf32>
    %1 = vector.shape_cast %0 : vector<2x8x32xf32> to vector<16x32xf32>
    %c0_2 = arith.constant 0 : index
    %c0_3 = arith.constant 0 : index
    %2 = vector.load %arg3[%c0_2, %c0_3] : memref<32x32xf32, #tpu.memory_space<vmem>>, vector<32x32xf32>
    %cst = arith.constant dense<0.000000e+00> : vector<16x32xf32>
    %3 = tpu.matmul %1, %2, %cst {dimension_numbers = #tpu.dot_dimension_numbers<[1], [0], [0], [1], [0, 0, 1, 1], [], []>} : vector<16x32xf32>, vector<32x32xf32>, vector<16x32xf32> -> vector<16x32xf32>
    %c0_4 = arith.constant 0 : index
    %c0_5 = arith.constant 0 : index
    %4 = vector.load %arg4[%c0_4, %c0_5] : memref<1x32xf32, #tpu.memory_space<vmem>>, vector<1x32xf32>
    %5 = vector.broadcast %4 : vector<1x32xf32> to vector<16x32xf32>
    %6 = arith.addf %3, %5 : vector<16x32xf32>
    %7 = math.tanh %6 : vector<16x32xf32>
    %c0_6 = arith.constant 0 : index
    %c0_7 = arith.constant 0 : index
    %8 = vector.load %arg5[%c0_6, %c0_7] : memref<1x32xf32, #tpu.memory_space<vmem>>, vector<1x32xf32>
    %9 = vector.broadcast %8 : vector<1x32xf32> to vector<16x32xf32>
    %10 = arith.mulf %7, %9 : vector<16x32xf32>
    %cst_8 = arith.constant dense<0.000000e+00> : vector<16xf32>
    %11 = vector.multi_reduction <add>, %10, %cst_8 [1] : vector<16x32xf32> to vector<16xf32>
    %12 = vector.shape_cast %11 : vector<16xf32> to vector<16x1xf32>
    %c0_9 = arith.constant 0 : index
    %c0_10 = arith.constant 0 : index
    %13 = memref.load %arg6[%c0_9, %c0_10] : memref<1x1xf32, #tpu.memory_space<smem>>
    %14 = vector.broadcast %13 : f32 to vector<16x1xf32>
    %15 = arith.addf %12, %14 : vector<16x1xf32>
    %16 = math.exp %15 : vector<16x1xf32>
    %17 = vector.shape_cast %16 : vector<16x1xf32> to vector<2x8x1xf32>
    %c0_11 = arith.constant 0 : index
    %c0_12 = arith.constant 0 : index
    %18 = vector.load %arg2[%c0_11, %c0_12] : memref<2x8xf32, #tpu.memory_space<vmem>>, vector<2x8xf32>
    %19 = vector.shape_cast %18 : vector<2x8xf32> to vector<2x8x1xf32>
    %20 = arith.mulf %17, %19 : vector<2x8x1xf32>
    %cst_13 = arith.constant dense<0.000000e+00> : vector<2x1xf32>
    %21 = vector.multi_reduction <add>, %20, %cst_13 [1] : vector<2x8x1xf32> to vector<2x1xf32>
    %22 = vector.shape_cast %21 : vector<2x1xf32> to vector<2x1x1xf32>
    %cst_14 = arith.constant 9.99999993E-9 : f32
    %23 = vector.broadcast %cst_14 : f32 to vector<2x1x1xf32>
    %24 = arith.addf %22, %23 : vector<2x1x1xf32>
    %cst_15 = arith.constant 1.000000e+00 : f32
    %25 = vector.broadcast %cst_15 : f32 to vector<2x1x1xf32>
    %26 = arith.divf %25, %24 : vector<2x1x1xf32>
    %27 = vector.broadcast %26 : vector<2x1x1xf32> to vector<2x8x1xf32>
    %28 = arith.mulf %20, %27 : vector<2x8x1xf32>
    %29 = vector.broadcast %28 : vector<2x8x1xf32> to vector<2x8x32xf32>
    %30 = arith.mulf %0, %29 : vector<2x8x32xf32>
    %cst_16 = arith.constant dense<0.000000e+00> : vector<2x32xf32>
    %31 = vector.multi_reduction <add>, %30, %cst_16 [1] : vector<2x8x32xf32> to vector<2x32xf32>
    %c0_17 = arith.constant 0 : index
    %c0_18 = arith.constant 0 : index
    %32 = vector.load %arg7[%c0_17, %c0_18] : memref<2x32xf32, #tpu.memory_space<vmem>>, vector<2x32xf32>
    tpu.vector_store %arg7[%c0_17, %c0_18], %31 {strides = array<i32>} : memref<2x32xf32, #tpu.memory_space<vmem>>, vector<2x32xf32>,
    return
  }
  func.func @transform_0(%arg0: i32) -> (i32, i32, i32) {
    %c0_i32 = arith.constant 0 : i32
    %c0_i32_0 = arith.constant 0 : i32
    %c0_i32_1 = arith.constant 0 : i32
    return %arg0, %c0_i32, %c0_i32_0 : i32, i32, i32
  }
  func.func @transform_1(%arg0: i32) -> (i32, i32) {
    %c0_i32 = arith.constant 0 : i32
    %c0_i32_0 = arith.constant 0 : i32
    return %arg0, %c0_i32 : i32, i32
  }
  func.func @transform_2(%arg0: i32) -> (i32, i32) {
    %c0_i32 = arith.constant 0 : i32
    %c0_i32_0 = arith.constant 0 : i32
    %c0_i32_1 = arith.constant 0 : i32
    return %c0_i32, %c0_i32_0 : i32, i32
  }
  func.func @transform_3(%arg0: i32) -> (i32, i32) {
    %c0_i32 = arith.constant 0 : i32
    %c0_i32_0 = arith.constant 0 : i32
    %c0_i32_1 = arith.constant 0 : i32
    return %c0_i32, %c0_i32_0 : i32, i32
  }
  func.func @transform_4(%arg0: i32) -> (i32, i32) {
    %c0_i32 = arith.constant 0 : i32
    %c0_i32_0 = arith.constant 0 : i32
    %c0_i32_1 = arith.constant 0 : i32
    return %c0_i32, %c0_i32_0 : i32, i32
  }
  func.func @transform_5(%arg0: i32) -> (i32, i32) {
    %c0_i32 = arith.constant 0 : i32
    %c0_i32_0 = arith.constant 0 : i32
    %c0_i32_1 = arith.constant 0 : i32
    return %c0_i32, %c0_i32_0 : i32, i32
  }
  func.func @transform_6(%arg0: i32) -> (i32, i32) {
    %c0_i32 = arith.constant 0 : i32
    %c0_i32_0 = arith.constant 0 : i32
    return %arg0, %c0_i32 : i32, i32
  }
}

</mosaic_0001>

<llo_original>
// kernel: tpu_custom_call.1
$region0: #{tpu_custom_call.1}
  #allocation0 [shape = 'u32[]', space=smem, size = 0x4, offset = 0x4, fixed_abs, tag = 'smem constant byte address 0x4 - core index']
  #allocation1 [shape = 'u32[144,128]{1,0:T(1,128)}', space=vmem, size = 0x12000, scoped, tag = 'internal scratch']
  #allocation2 [shape = 'f32[1,1]{1,0:T(1,128)S(6)}', space=smem, size = 0x200, scoped, tag = 'scoped memory for tpu_custom_call.1']
  %s0 = inlined_call_operand.hbm [shape: f32[2,8,32], index: 0, kind: input, shape index: {}]
  %s1 = inlined_call_operand.vmem [shape: f32[2,8], index: 1, kind: input, shape index: {}]
  %s2 = inlined_call_operand.hbm [shape: f32[32,32], index: 2, kind: input, shape index: {}]
  %s3 = inlined_call_operand.vmem [shape: f32[1,32], index: 3, kind: input, shape index: {}]
  %s4 = inlined_call_operand.vmem [shape: f32[1,32], index: 4, kind: input, shape index: {}]
  %s5 = inlined_call_operand.<no memory space> [shape: f32[1,1], index: 5, kind: input, shape index: {}]
  %s6 = inlined_call_operand.hbm [shape: f32[2,32], index: 6, kind: output, shape index: {}]
  %s7 = sld [smem:[#allocation0]]
  $region42: #{tpu_custom_call.1} parent=0
    _
  %s9 = ssub.s32 1, %s7
  %s10 = scalar_select 0, %s9, %s7
  %11 = sst [smem:[#allocation2]] %s5
  $region1: #{tpu_custom_call.1} parent=0
    #allocation3 [shape = 'u8[8192]{0}', space=vmem, size = 0x2000, scoped, tag = 'input window, operand 0, single buffered']
    #allocation4 [shape = 's32[1]{0}', space=sflag, size = 0x4, scoped, tag = 'scoped memory for tpu_custom_call.1']
    #allocation5 [shape = 's32[1]{0}', space=sflag, size = 0x4, scoped, tag = 'scoped memory for tpu_custom_call.1']
    #allocation6 [shape = 'u8[16384]{0}', space=vmem, size = 0x4000, scoped, tag = 'input window, operand 2, single buffered']
    #allocation7 [shape = 's32[1]{0}', space=sflag, size = 0x4, scoped, tag = 'scoped memory for tpu_custom_call.1']
    #allocation8 [shape = 'u8[1024]{0}', space=vmem, size = 0x400, scoped, tag = 'output window, operand 0, single buffered']
    %12 = vsyncpa [#allocation4], 0
    %13 = vsyncpa [#allocation7], 0
    %14 = vsyncpa [#allocation5], 0
    // Predicated region
    $region2: #{tpu_custom_call.1} parent=1 // pred_check
      _
    $region3: #{tpu_custom_call.1} parent=1 // pred_check_branch
      %16 = sbr.rel (0) target = $region5
    $region4: #{tpu_custom_call.1} parent=1 // pred_region
      %s18 = ssub.s32 256, 256
      %19 = vsyncadd [#allocation4], %s18
      %s20 = sshll.u32 [#allocation3], 4
      %s21 = int_to_ptr.vmem [resolvable:$true] %s20
      %26 = dma.hbm_to_vmem [thread:$0]  %s0, 256, %s21, [#allocation4], 128, 128, 8
    $region5: #{tpu_custom_call.1} parent=1 // pred_fallthru
      _
    // Predicated region
    $region6: #{tpu_custom_call.1} parent=1 // pred_check
      _
    $region7: #{tpu_custom_call.1} parent=1 // pred_check_branch
      %28 = sbr.rel (0) target = $region9
    $region8: #{tpu_custom_call.1} parent=1 // pred_region
      _
    $region9: #{tpu_custom_call.1} parent=1 // pred_fallthru
      _
    // Predicated region
    $region10: #{tpu_custom_call.1} parent=1 // pred_check
      _
    $region11: #{tpu_custom_call.1} parent=1 // pred_check_branch
      %30 = sbr.rel (0) target = $region13
    $region12: #{tpu_custom_call.1} parent=1 // pred_region
      %s32 = ssub.s32 512, 512
      %33 = vsyncadd [#allocation7], %s32
      %s34 = sshll.u32 [#allocation6], 4
      %s35 = int_to_ptr.vmem [resolvable:$true] %s34
      %40 = dma.hbm_to_vmem [thread:$0]  %s2, 512, %s35, [#allocation7], 128, 128, 8
    $region13: #{tpu_custom_call.1} parent=1 // pred_fallthru
      _
    // Predicated region
    $region14: #{tpu_custom_call.1} parent=1 // pred_check
      _
    $region15: #{tpu_custom_call.1} parent=1 // pred_check_branch
      %42 = sbr.rel (0) target = $region17
    $region16: #{tpu_custom_call.1} parent=1 // pred_region
      _
    $region17: #{tpu_custom_call.1} parent=1 // pred_fallthru
      _
    // Predicated region
    $region18: #{tpu_custom_call.1} parent=1 // pred_check
      _
    $region19: #{tpu_custom_call.1} parent=1 // pred_check_branch
      %44 = sbr.rel (0) target = $region21
    $region20: #{tpu_custom_call.1} parent=1 // pred_region
      _
    $region21: #{tpu_custom_call.1} parent=1 // pred_fallthru
      _
    // Predicated region
    $region22: #{tpu_custom_call.1} parent=1 // pred_check
      _
    $region23: #{tpu_custom_call.1} parent=1 // pred_check_branch
      %46 = sbr.rel (0) target = $region25
    $region24: #{tpu_custom_call.1} parent=1 // pred_region
      _
    $region25: #{tpu_custom_call.1} parent=1 // pred_fallthru
      _
    // Predicated region
    $region26: #{tpu_custom_call.1} parent=1 // pred_check
      _
    $region27: #{tpu_custom_call.1} parent=1 // pred_check_branch
      %48 = sbr.rel (0) target = $region29
    $region28: #{tpu_custom_call.1} parent=1 // pred_region
      %49 = dma.done [#allocation4], 256
    $region29: #{tpu_custom_call.1} parent=1 // pred_fallthru
      _
    // Predicated region
    $region30: #{tpu_custom_call.1} parent=1 // pred_check
      _
    $region31: #{tpu_custom_call.1} parent=1 // pred_check_branch
      %51 = sbr.rel (0) target = $region33
    $region32: #{tpu_custom_call.1} parent=1 // pred_region
      %52 = dma.done [#allocation7], 512
    $region33: #{tpu_custom_call.1} parent=1 // pred_fallthru
      _
    %v53 = vld [vmem:[#allocation3] sm:$0xff]
    %v54 = vld [vmem:[#allocation3 + $0x8] sm:$0xff]
    %v55 = vld [vmem:[#allocation6] sm:$0xff]
    %v56 = vld [vmem:[#allocation6 + $0x8] sm:$0xff]
    %v57 = vld [vmem:[#allocation6 + $0x10] sm:$0xff]
    %v58 = vld [vmem:[#allocation6 + $0x18] sm:$0xff]
    %v59 = vld [vmem:[%s3] sm:$0x1]
    %v61 = vlaneseq
    %v62 = vshrl.u32 %v61, 7
    %v63 = vsub.s32 0, %v62
    %v64 = vrot.slane %v59, %v63
    %vm66 = vcmask 261120
    %v68 = vsel %vm66, %v53, 0
    %v71 = vsel %vm66, %v54, 0
    %73 = vmatprep.subr.mxu0 0.0
    %74 = vmatpush1.msra.mxu0 0.0
    %75 = vmatprep.subr.mxu0 0.0
    %76 = vmatpush1.msra.mxu0 0.0
    %77 = vmatprep.subr.mxu0 0.0
    %78 = vmatpush1.msra.mxu0 0.0
    %79 = vmatprep.subr.mxu0 0.0
    %80 = vmatpush1.msra.mxu0 0.0
    %81 = vmatprep.subr.mxu0 0.0
    %82 = vmatpush1.msra.mxu0 0.0
    %83 = vmatprep.subr.mxu0 0.0
    %84 = vmatpush1.msra.mxu0 0.0
    %85 = vmatprep.subr.mxu0 0.0
    %86 = vmatpush1.msra.mxu0 0.0
    %87 = vmatprep.subr.mxu0 0.0
    %88 = vmatpush1.msra.mxu0 0.0
    %89 = vmatprep.subr.mxu0 0.0
    %90 = vmatpush1.msra.mxu0 0.0
    %91 = vmatprep.subr.mxu0 0.0
    %92 = vmatpush1.msra.mxu0 0.0
    %93 = vmatprep.subr.mxu0 0.0
    %94 = vmatpush1.msra.mxu0 0.0
    %95 = vmatprep.subr.mxu0 0.0
    %96 = vmatpush1.msra.mxu0 0.0
    %97 = vmatprep.subr.mxu0 0.0
    %98 = vmatpush1.msra.mxu0 %v58
    %99 = vmatprep.subr.mxu0 0.0
    %100 = vmatpush1.msra.mxu0 %v57
    %101 = vmatprep.subr.mxu0 0.0
    %102 = vmatpush1.msra.mxu0 %v56
    %103 = vmatprep.subr.mxu0 0.0
    %104 = vmatpush1.msra.mxu0 %v55
    %105 = vmatprep.subr.mxu0 0.0
    %106 = vmatpush2.msra.mxu0 0.0
    %107 = vmatprep.subr.mxu0 0.0
    %108 = vmatpush2.msra.mxu0 0.0
    %109 = vmatprep.subr.mxu0 0.0
    %110 = vmatpush2.msra.mxu0 0.0
    %111 = vmatprep.subr.mxu0 0.0
    %112 = vmatpush2.msra.mxu0 0.0
    %113 = vmatprep.subr.mxu0 0.0
    %114 = vmatpush2.msra.mxu0 0.0
    %115 = vmatprep.subr.mxu0 0.0
    %116 = vmatpush2.msra.mxu0 0.0
    %117 = vmatprep.subr.mxu0 0.0
    %118 = vmatpush2.msra.mxu0 0.0
    %119 = vmatprep.subr.mxu0 0.0
    %120 = vmatpush2.msra.mxu0 0.0
    %121 = vmatprep.subr.mxu0 0.0
    %122 = vmatpush2.msra.mxu0 0.0
    %123 = vmatprep.subr.mxu0 0.0
    %124 = vmatpush2.msra.mxu0 0.0
    %125 = vmatprep.subr.mxu0 0.0
    %126 = vmatpush2.msra.mxu0 0.0
    %127 = vmatprep.subr.mxu0 0.0
    %128 = vmatpush2.msra.mxu0 0.0
    %129 = vmatprep.subr.mxu0 0.0
    %130 = vmatpush2.msra.mxu0 0.0
    %131 = vmatprep.subr.mxu0 0.0
    %132 = vmatpush2.msra.mxu0 0.0
    %133 = vmatprep.subr.mxu0 0.0
    %134 = vmatpush2.msra.mxu0 0.0
    %135 = vmatprep.subr.mxu0 0.0
    %136 = vmatpush2.msra.mxu0 0.0
    %137 = vmatprep.mubr.f32.mxu0 0.0
    %138 = vmatmul.mubr.f32.gmra.mxu0 %v68
    %v139 = vpop.f32.mrf.mxu0
    %v140 = vadd.f32 %v64, %v139
    %v141 = vpop.f32.mrf.mxu0
    %142 = vmatprep.mubr.f32.mxu0 0.0
    %143 = vmatmul.mubr.f32.gmra.mxu0 %v71
    %v144 = vpop.f32.mrf.mxu0
    %v145 = vadd.f32 %v64, %v144
    %v146 = vpop.f32.mrf.mxu0
    %147 = vdwg.mxu0
    %v148 = vtanh.pop %v140
    %v149 = vtanh.pop %v145
    %v150 = vld [vmem:[%s4] sm:$0x1]
    %v152 = vlaneseq
    %v153 = vshrl.u32 %v152, 7
    %v154 = vsub.s32 0, %v153
    %v155 = vrot.slane %v150, %v154
    %v157 = vmul.f32 %v148, %v155
    %v158 = vmul.f32 %v149, %v155
    %v159 = vsel %vm66, %v157, 0.0
    %160 = vadd.xlane.f32.xlu0 %v159
    %v161 = vpop.xlane.xlu0 %160
    %v162 = vsel %vm66, %v158, 0.0
    %163 = vadd.xlane.f32.xlu0 %v162
    %v164 = vpop.xlane.xlu0 %163
    %s165 = sld [smem:[#allocation2]]
    %v166 = vstv %s165
    %v167 = vadd.f32 %v161, %v166
    %v168 = vadd.f32 %v164, %v166
    %v169 = vmul.f32 %v167, 1.442695
    %v170 = vpow.pop %v169
    %v171 = vmul.f32 %v168, 1.442695
    %v172 = vpow.pop %v171
    %v173 = vld [vmem:[%s1] sm:$0x3]
    %v174 = vlaneseq
    %v175 = vshrl.u32 %v174, 7
    %v176 = vsub.s32 0, %v175
    %v177 = vrot.slane %v173, %v176
    %179 = vbcast.lane.b32.xlu0 %v177, 256
    %v180 = vpop.permute.xlu0 %179
    %v181 = vlaneseq
    %v182 = vshrl.u32 %v181, 7
    %v183 = vsub.s32 1, %v182
    %v184 = vrot.slane %v173, %v183
    %186 = vbcast.lane.b32.xlu0 %v184, 256
    %v187 = vpop.permute.xlu0 %186
    %v188 = vmul.f32 %v170, %v180
    %v189 = vmul.f32 %v172, %v187
    %v190 = vrot.slane %v188, 4
    %v191 = vadd.f32 %v188, %v190
    %v192 = vrot.slane %v191, 2
    %v193 = vadd.f32 %v191, %v192
    %v194 = vrot.slane %v193, 1
    %v195 = vadd.f32 %v193, %v194
    %v196 = vrot.slane %v189, 4
    %v197 = vadd.f32 %v189, %v196
    %v198 = vrot.slane %v197, 2
    %v199 = vadd.f32 %v197, %v198
    %v200 = vrot.slane %v199, 1
    %v201 = vadd.f32 %v199, %v200
    %v202 = vadd.f32 %v195, 1e-08
    %v203 = vadd.f32 %v201, 1e-08
    %v204 = vrcp.pop %v202
    %v205 = vmul.f32 1.0, %v204
    %v206 = vrcp.pop %v203
    %v207 = vmul.f32 1.0, %v206
    %v208 = vmul.f32 %v188, %v205
    %v209 = vmul.f32 %v189, %v207
    %v210 = vmul.f32 %v53, %v208
    %v211 = vmul.f32 %v54, %v209
    %v212 = vsel %vm66, %v210, 0.0
    %v213 = vrot.slane %v212, 4
    %v214 = vadd.f32 %v212, %v213
    %v215 = vrot.slane %v214, 2
    %v216 = vadd.f32 %v214, %v215
    %v217 = vrot.slane %v216, 1
    %v218 = vadd.f32 %v216, %v217
    %v219 = vsel %vm66, %v211, 0.0
    %v220 = vrot.slane %v219, 4
    %v221 = vadd.f32 %v219, %v220
    %v222 = vrot.slane %v221, 2
    %v223 = vadd.f32 %v221, %v222
    %v224 = vrot.slane %v223, 1
    %v225 = vadd.f32 %v223, %v224
    %vm228 = vcmask 1041409
    %v229 = vsel %vm228, %v225, %v218
    %vm231 = vcmask 254976
    %232 = vst.msk [vmem:[#allocation8] sm:$0x3] %vm231, %v229
    // Predicated region
    $region34: #{tpu_custom_call.1} parent=1 // pred_check
      _
    $region35: #{tpu_custom_call.1} parent=1 // pred_check_branch
      %234 = sbr.rel (0) target = $region37
    $region36: #{tpu_custom_call.1} parent=1 // pred_region
      %s236 = ssub.s32 32, 32
      %237 = vsyncadd [#allocation5], %s236
      %s239 = sshll.u32 [#allocation8], 4
      %s240 = int_to_ptr.vmem [resolvable:$true] %s239
      %242 = dma.vmem_to_hbm [thread:$0]  %s240, 32, %s6, [#allocation5]
    $region37: #{tpu_custom_call.1} parent=1 // pred_fallthru
      _
    // Predicated region
    $region38: #{tpu_custom_call.1} parent=1 // pred_check
      _
    $region39: #{tpu_custom_call.1} parent=1 // pred_check_branch
      %244 = sbr.rel (0) target = $region41
    $region40: #{tpu_custom_call.1} parent=1 // pred_region
      %245 = dma.done [#allocation5], 32
    $region41: #{tpu_custom_call.1} parent=1 // pred_fallthru
      _
    %246 = vsyncpa [#allocation4], 1
    %247 = vsyncpa [#allocation7], 1
    %248 = vsyncpa [#allocation5], 1

// kernel: tpu_custom_call.1
$region0: #{tpu_custom_call.1}
  #allocation0 [shape = 'u32[]', space=smem, size = 0x4, offset = 0x4, fixed_abs, tag = 'smem constant byte address 0x4 - core index']
  #allocation1 [shape = 'u32[144,128]{1,0:T(1,128)}', space=vmem, size = 0x12000, scoped, tag = 'internal scratch']
  #allocation2 [shape = 'f32[1,1]{1,0:T(1,128)S(6)}', space=smem, size = 0x200, scoped, tag = 'scoped memory for tpu_custom_call.1']
  %s0 = inlined_call_operand.hbm [shape: f32[2,8,32], index: 0, kind: input, shape index: {}]
  %s1 = inlined_call_operand.vmem [shape: f32[2,8], index: 1, kind: input, shape index: {}]
  %s2 = inlined_call_operand.hbm [shape: f32[32,32], index: 2, kind: input, shape index: {}]
  %s3 = inlined_call_operand.vmem [shape: f32[1,32], index: 3, kind: input, shape index: {}]
  %s4 = inlined_call_operand.vmem [shape: f32[1,32], index: 4, kind: input, shape index: {}]
  %s5 = inlined_call_operand.<no memory space> [shape: f32[1,1], index: 5, kind: input, shape index: {}]
  %s6 = inlined_call_operand.hbm [shape: f32[2,32], index: 6, kind: output, shape index: {}]
  %s7 = sld [smem:[#allocation0]]
  $region42: #{tpu_custom_call.1} parent=0
    _
  %s9 = ssub.s32 1, %s7
  %s10 = scalar_select 0, %s9, %s7
  %11 = sst [smem:[#allocation2]] %s5
  $region1: #{tpu_custom_call.1} parent=0
    #allocation3 [shape = 'u8[8192]{0}', space=vmem, size = 0x2000, scoped, tag = 'input window, operand 0, single buffered']
    #allocation4 [shape = 's32[1]{0}', space=sflag, size = 0x4, scoped, tag = 'scoped memory for tpu_custom_call.1']
    #allocation5 [shape = 's32[1]{0}', space=sflag, size = 0x4, scoped, tag = 'scoped memory for tpu_custom_call.1']
    #allocation6 [shape = 'u8[16384]{0}', space=vmem, size = 0x4000, scoped, tag = 'input window, operand 2, single buffered']
    #allocation7 [shape = 's32[1]{0}', space=sflag, size = 0x4, scoped, tag = 'scoped memory for tpu_custom_call.1']
    #allocation8 [shape = 'u8[1024]{0}', space=vmem, size = 0x400, scoped, tag = 'output window, operand 0, single buffered']
    %12 = vsyncpa [#allocation4], 0
    %13 = vsyncpa [#allocation7], 0
    %14 = vsyncpa [#allocation5], 0
    // Predicated region
    $region2: #{tpu_custom_call.1} parent=1 // pred_check
      _
    $region3: #{tpu_custom_call.1} parent=1 // pred_check_branch
      %16 = sbr.rel (0) target = $region5
    $region4: #{tpu_custom_call.1} parent=1 // pred_region
      %s18 = ssub.s32 256, 256
      %19 = vsyncadd [#allocation4], %s18
      %s20 = sshll.u32 [#allocation3], 4
      %s21 = int_to_ptr.vmem [resolvable:$true] %s20
      %26 = dma.hbm_to_vmem [thread:$0]  %s0, 256, %s21, [#allocation4], 128, 128, 8
    $region5: #{tpu_custom_call.1} parent=1 // pred_fallthru
      _
    // Predicated region
    $region6: #{tpu_custom_call.1} parent=1 // pred_check
      _
    $region7: #{tpu_custom_call.1} parent=1 // pred_check_branch
      %28 = sbr.rel (0) target = $region9
    $region8: #{tpu_custom_call.1} parent=1 // pred_region
      _
    $region9: #{tpu_custom_call.1} parent=1 // pred_fallthru
      _
    // Predicated region
    $region10: #{tpu_custom_call.1} parent=1 // pred_check
      _
    $region11: #{tpu_custom_call.1} parent=1 // pred_check_branch
      %30 = sbr.rel (0) target = $region13
    $region12: #{tpu_custom_call.1} parent=1 // pred_region
      %s32 = ssub.s32 512, 512
      %33 = vsyncadd [#allocation7], %s32
      %s34 = sshll.u32 [#allocation6], 4
      %s35 = int_to_ptr.vmem [resolvable:$true] %s34
      %40 = dma.hbm_to_vmem [thread:$0]  %s2, 512, %s35, [#allocation7], 128, 128, 8
    $region13: #{tpu_custom_call.1} parent=1 // pred_fallthru
      _
    // Predicated region
    $region14: #{tpu_custom_call.1} parent=1 // pred_check
      _
    $region15: #{tpu_custom_call.1} parent=1 // pred_check_branch
      %42 = sbr.rel (0) target = $region17
    $region16: #{tpu_custom_call.1} parent=1 // pred_region
      _
    $region17: #{tpu_custom_call.1} parent=1 // pred_fallthru
      _
    // Predicated region
    $region18: #{tpu_custom_call.1} parent=1 // pred_check
      _
    $region19: #{tpu_custom_call.1} parent=1 // pred_check_branch
      %44 = sbr.rel (0) target = $region21
    $region20: #{tpu_custom_call.1} parent=1 // pred_region
      _
    $region21: #{tpu_custom_call.1} parent=1 // pred_fallthru
      _
    // Predicated region
    $region22: #{tpu_custom_call.1} parent=1 // pred_check
      _
    $region23: #{tpu_custom_call.1} parent=1 // pred_check_branch
      %46 = sbr.rel (0) target = $region25
    $region24: #{tpu_custom_call.1} parent=1 // pred_region
      _
    $region25: #{tpu_custom_call.1} parent=1 // pred_fallthru
      _
    // Predicated region
    $region26: #{tpu_custom_call.1} parent=1 // pred_check
      _
    $region27: #{tpu_custom_call.1} parent=1 // pred_check_branch
      %48 = sbr.rel (0) target = $region29
    $region28: #{tpu_custom_call.1} parent=1 // pred_region
      %49 = dma.done [#allocation4], 256
    $region29: #{tpu_custom_call.1} parent=1 // pred_fallthru
      _
    // Predicated region
    $region30: #{tpu_custom_call.1} parent=1 // pred_check
      _
    $region31: #{tpu_custom_call.1} parent=1 // pred_check_branch
      %51 = sbr.rel (0) target = $region33
    $region32: #{tpu_custom_call.1} parent=1 // pred_region
      %52 = dma.done [#allocation7], 512
    $region33: #{tpu_custom_call.1} parent=1 // pred_fallthru
      _
    %v53 = vld [vmem:[#allocation3] sm:$0xff]
    %v54 = vld [vmem:[#allocation3 + $0x8] sm:$0xff]
    %v55 = vld [vmem:[#allocation6] sm:$0xff]
    %v56 = vld [vmem:[#allocation6 + $0x8] sm:$0xff]
    %v57 = vld [vmem:[#allocation6 + $0x10] sm:$0xff]
    %v58 = vld [vmem:[#allocation6 + $0x18] sm:$0xff]
    %v59 = vld [vmem:[%s3] sm:$0x1]
    %v61 = vlaneseq
    %v62 = vshrl.u32 %v61, 7
    %v63 = vsub.s32 0, %v62
    %v64 = vrot.slane %v59, %v63
    %vm66 = vcmask 261120
    %v68 = vsel %vm66, %v53, 0
    %v71 = vsel %vm66, %v54, 0
    %73 = vmatprep.subr.mxu0 0.0
    %74 = vmatpush1.msra.mxu0 0.0
    %75 = vmatprep.subr.mxu0 0.0
    %76 = vmatpush1.msra.mxu0 0.0
    %77 = vmatprep.subr.mxu0 0.0
    %78 = vmatpush1.msra.mxu0 0.0
    %79 = vmatprep.subr.mxu0 0.0
    %80 = vmatpush1.msra.mxu0 0.0
    %81 = vmatprep.subr.mxu0 0.0
    %82 = vmatpush1.msra.mxu0 0.0
    %83 = vmatprep.subr.mxu0 0.0
    %84 = vmatpush1.msra.mxu0 0.0
    %85 = vmatprep.subr.mxu0 0.0
    %86 = vmatpush1.msra.mxu0 0.0
    %87 = vmatprep.subr.mxu0 0.0
    %88 = vmatpush1.msra.mxu0 0.0
    %89 = vmatprep.subr.mxu0 0.0
    %90 = vmatpush1.msra.mxu0 0.0
    %91 = vmatprep.subr.mxu0 0.0
    %92 = vmatpush1.msra.mxu0 0.0
    %93 = vmatprep.subr.mxu0 0.0
    %94 = vmatpush1.msra.mxu0 0.0
    %95 = vmatprep.subr.mxu0 0.0
    %96 = vmatpush1.msra.mxu0 0.0
    %97 = vmatprep.subr.mxu0 0.0
    %98 = vmatpush1.msra.mxu0 %v58
    %99 = vmatprep.subr.mxu0 0.0
    %100 = vmatpush1.msra.mxu0 %v57
    %101 = vmatprep.subr.mxu0 0.0
    %102 = vmatpush1.msra.mxu0 %v56
    %103 = vmatprep.subr.mxu0 0.0
    %104 = vmatpush1.msra.mxu0 %v55
    %105 = vmatprep.subr.mxu0 0.0
    %106 = vmatpush2.msra.mxu0 0.0
    %107 = vmatprep.subr.mxu0 0.0
    %108 = vmatpush2.msra.mxu0 0.0
    %109 = vmatprep.subr.mxu0 0.0
    %110 = vmatpush2.msra.mxu0 0.0
    %111 = vmatprep.subr.mxu0 0.0
    %112 = vmatpush2.msra.mxu0 0.0
    %113 = vmatprep.subr.mxu0 0.0
    %114 = vmatpush2.msra.mxu0 0.0
    %115 = vmatprep.subr.mxu0 0.0
    %116 = vmatpush2.msra.mxu0 0.0
    %117 = vmatprep.subr.mxu0 0.0
    %118 = vmatpush2.msra.mxu0 0.0
    %119 = vmatprep.subr.mxu0 0.0
    %120 = vmatpush2.msra.mxu0 0.0
    %121 = vmatprep.subr.mxu0 0.0
    %122 = vmatpush2.msra.mxu0 0.0
    %123 = vmatprep.subr.mxu0 0.0
    %124 = vmatpush2.msra.mxu0 0.0
    %125 = vmatprep.subr.mxu0 0.0
    %126 = vmatpush2.msra.mxu0 0.0
    %127 = vmatprep.subr.mxu0 0.0
    %128 = vmatpush2.msra.mxu0 0.0
    %129 = vmatprep.subr.mxu0 0.0
    %130 = vmatpush2.msra.mxu0 0.0
    %131 = vmatprep.subr.mxu0 0.0
    %132 = vmatpush2.msra.mxu0 0.0
    %133 = vmatprep.subr.mxu0 0.0
    %134 = vmatpush2.msra.mxu0 0.0
    %135 = vmatprep.subr.mxu0 0.0
    %136 = vmatpush2.msra.mxu0 0.0
    %137 = vmatprep.mubr.f32.mxu0 0.0
    %138 = vmatmul.mubr.f32.gmra.mxu0 %v68
    %v139 = vpop.f32.mrf.mxu0
    %v140 = vadd.f32 %v64, %v139
    %v141 = vpop.f32.mrf.mxu0
    %142 = vmatprep.mubr.f32.mxu0 0.0
    %143 = vmatmul.mubr.f32.gmra.mxu0 %v71
    %v144 = vpop.f32.mrf.mxu0
    %v145 = vadd.f32 %v64, %v144
    %v146 = vpop.f32.mrf.mxu0
    %147 = vdwg.mxu0
    %v148 = vtanh.pop %v140
    %v149 = vtanh.pop %v145
    %v150 = vld [vmem:[%s4] sm:$0x1]
    %v152 = vlaneseq
    %v153 = vshrl.u32 %v152, 7
    %v154 = vsub.s32 0, %v153
    %v155 = vrot.slane %v150, %v154
    %v157 = vmul.f32 %v148, %v155
    %v158 = vmul.f32 %v149, %v155
    %v159 = vsel %vm66, %v157, 0.0
    %160 = vadd.xlane.f32.xlu0 %v159
    %v161 = vpop.xlane.xlu0 %160
    %v162 = vsel %vm66, %v158, 0.0
    %163 = vadd.xlane.f32.xlu0 %v162
    %v164 = vpop.xlane.xlu0 %163
    %s165 = sld [smem:[#allocation2]]
    %v166 = vstv %s165
    %v167 = vadd.f32 %v161, %v166
    %v168 = vadd.f32 %v164, %v166
    %v169 = vmul.f32 %v167, 1.442695
    %v170 = vpow.pop %v169
    %v171 = vmul.f32 %v168, 1.442695
    %v172 = vpow.pop %v171
    %v173 = vld [vmem:[%s1] sm:$0x3]
    %v174 = vlaneseq
    %v175 = vshrl.u32 %v174, 7
    %v176 = vsub.s32 0, %v175
    %v177 = vrot.slane %v173, %v176
    %179 = vbcast.lane.b32.xlu0 %v177, 256
    %v180 = vpop.permute.xlu0 %179
    %v181 = vlaneseq
    %v182 = vshrl.u32 %v181, 7
    %v183 = vsub.s32 1, %v182
    %v184 = vrot.slane %v173, %v183
    %186 = vbcast.lane.b32.xlu0 %v184, 256
    %v187 = vpop.permute.xlu0 %186
    %v188 = vmul.f32 %v170, %v180
    %v189 = vmul.f32 %v172, %v187
    %v190 = vrot.slane %v188, 4
    %v191 = vadd.f32 %v188, %v190
    %v192 = vrot.slane %v191, 2
    %v193 = vadd.f32 %v191, %v192
    %v194 = vrot.slane %v193, 1
    %v195 = vadd.f32 %v193, %v194
    %v196 = vrot.slane %v189, 4
    %v197 = vadd.f32 %v189, %v196
    %v198 = vrot.slane %v197, 2
    %v199 = vadd.f32 %v197, %v198
    %v200 = vrot.slane %v199, 1
    %v201 = vadd.f32 %v199, %v200
    %v202 = vadd.f32 %v195, 1e-08
    %v203 = vadd.f32 %v201, 1e-08
    %v204 = vrcp.pop %v202
    %v205 = vmul.f32 1.0, %v204
    %v206 = vrcp.pop %v203
    %v207 = vmul.f32 1.0, %v206
    %v208 = vmul.f32 %v188, %v205
    %v209 = vmul.f32 %v189, %v207
    %v210 = vmul.f32 %v53, %v208
    %v211 = vmul.f32 %v54, %v209
    %v212 = vsel %vm66, %v210, 0.0
    %v213 = vrot.slane %v212, 4
    %v214 = vadd.f32 %v212, %v213
    %v215 = vrot.slane %v214, 2
    %v216 = vadd.f32 %v214, %v215
    %v217 = vrot.slane %v216, 1
    %v218 = vadd.f32 %v216, %v217
    %v219 = vsel %vm66, %v211, 0.0
    %v220 = vrot.slane %v219, 4
    %v221 = vadd.f32 %v219, %v220
    %v222 = vrot.slane %v221, 2
    %v223 = vadd.f32 %v221, %v222
    %v224 = vrot.slane %v223, 1
    %v225 = vadd.f32 %v223, %v224
    %vm228 = vcmask 1041409
    %v229 = vsel %vm228, %v225, %v218
    %vm231 = vcmask 254976
    %232 = vst.msk [vmem:[#allocation8] sm:$0x3] %vm231, %v229
    // Predicated region
    $region34: #{tpu_custom_call.1} parent=1 // pred_check
      _
    $region35: #{tpu_custom_call.1} parent=1 // pred_check_branch
      %234 = sbr.rel (0) target = $region37
    $region36: #{tpu_custom_call.1} parent=1 // pred_region
      %s236 = ssub.s32 32, 32
      %237 = vsyncadd [#allocation5], %s236
      %s239 = sshll.u32 [#allocation8], 4
      %s240 = int_to_ptr.vmem [resolvable:$true] %s239
      %242 = dma.vmem_to_hbm [thread:$0]  %s240, 32, %s6, [#allocation5]
    $region37: #{tpu_custom_call.1} parent=1 // pred_fallthru
      _
    // Predicated region
    $region38: #{tpu_custom_call.1} parent=1 // pred_check
      _
    $region39: #{tpu_custom_call.1} parent=1 // pred_check_branch
      %244 = sbr.rel (0) target = $region41
    $region40: #{tpu_custom_call.1} parent=1 // pred_region
      %245 = dma.done [#allocation5], 32
    $region41: #{tpu_custom_call.1} parent=1 // pred_fallthru
      _
    %246 = vsyncpa [#allocation4], 1
    %247 = vsyncpa [#allocation7], 1
    %248 = vsyncpa [#allocation5], 1

</llo_original>
